<compile_context>
chip_gen: v7x
topology: tpu7x:2x2x1
jax: 0.10.0
libtpu: 0.0.40
codegen_flags: <defaults>
</compile_context>

<pallas_src>
import functools

import jax
import jax.numpy as jnp
from jax.experimental import pallas as pl
from jax.experimental.pallas import tpu as pltpu

_BN_EPS = 1e-5
_LANE = 128
_SUBLANE = 8


def _round_up(x, m):
    return (x + m - 1) // m * m


def _make_act(activation: str):
    a = activation.lower()
    if a == "tanh":
        return jnp.tanh
    if a == "relu":
        return lambda v: jnp.maximum(v, 0.0)
    raise ValueError(f"unsupported activation: {activation}")


# ----------------------------------------------------------------------------
# Fused Pallas kernel (whole forward for one batch tile)
# ----------------------------------------------------------------------------
def _make_fc_kernel(num_fc_layers: int, activation: str):
    act = _make_act(activation)

    if num_fc_layers == 1:
        def kernel(x_ref, w_out_ref, o_ref):
            o_ref[...] = jnp.dot(
                x_ref[...], w_out_ref[...],
                preferred_element_type=jnp.float32).astype(o_ref.dtype)
        return kernel

    n_mid = num_fc_layers - 2  # number of 256->256 Linear(+act) layers

    def kernel(x_ref, w1_ref, b1_ref, *rest):
        *mid_refs, w_out_ref, o_ref = rest

        # Linear(in -> 256) with eval-mode BN pre-folded into w1/b1.
        # bf16 inputs on the MXU, f32 accumulation.
        h = jnp.dot(x_ref[...], w1_ref[...],
                    preferred_element_type=jnp.float32) + b1_ref[...]
        # Dropout is identity at inference; activation in f32 on the VPU.
        h = act(h)

        # Hidden Linear(256 -> 256) + act layers (0, 1 or 2 of them).
        for i in range(n_mid):
            w_ref = mid_refs[2 * i]
            b_ref = mid_refs[2 * i + 1]
            h = act(jnp.dot(h.astype(w_ref.dtype), w_ref[...],
                            preferred_element_type=jnp.float32) + b_ref[...])

        # Output Linear(256 -> out_pad), bias=False, lane-dense store.
        o_ref[...] = jnp.dot(h.astype(w_out_ref.dtype), w_out_ref[...],
                             preferred_element_type=jnp.float32
                             ).astype(o_ref.dtype)

    return kernel


# ----------------------------------------------------------------------------
# Wrapper-side parameter prep: fold BN, cast to bf16, pad output lanes.
# ----------------------------------------------------------------------------
def prepare_params(params, *, num_fc_layers=4, compute_dtype=jnp.bfloat16):
    p = {}
    out_size = params["w_out"].shape[1]
    out_pad = _round_up(out_size, _LANE)
    w_out = jnp.pad(params["w_out"].astype(jnp.float32),
                    ((0, 0), (0, out_pad - out_size)))
    p["w_out"] = w_out.astype(compute_dtype)
    if num_fc_layers == 1:
        return p

    # Fold eval-mode BatchNorm1d into the first Linear (mathematically exact).
    scale = params["bn_gamma"] * jax.lax.rsqrt(params["bn_var"] + _BN_EPS)
    p["w1"] = (params["w1"] * scale).astype(compute_dtype)           # (in,256)
    p["b1"] = ((params["b1"] - params["bn_mean"]) * scale
               + params["bn_beta"]).astype(jnp.float32)              # (1,256)
    for i in range(num_fc_layers - 2):
        p[f"w_mid{i}"] = params[f"w_mid{i}"].astype(compute_dtype)
        p[f"b_mid{i}"] = params[f"b_mid{i}"].astype(jnp.float32)
    return p


# ----------------------------------------------------------------------------
# pallas_call wrapper: batch-tiled grid, weights resident in VMEM
# ----------------------------------------------------------------------------
def fc_modules_forward(x, prepped, *, num_fc_layers=4, activation="relu",
                       output_size, block_m=256):
    """x: (B, input_size) f32. prepped: output of prepare_params.
    Returns (B, output_size) f32."""
    batch, in_size = x.shape
    out_pad = prepped["w_out"].shape[1]
    compute_dtype = prepped["w_out"].dtype

    # Batch tile: one (sublane-aligned) tile for small batches, 256-row tiles
    # otherwise.  Per-step working set = (TM*in + TM*256 + TM*out_pad)*bytes
    # + ~280 KiB bf16 weights -> far under v7x's 64 MiB VMEM.
    if batch <= block_m:
        tm = max(_SUBLANE, _round_up(batch, _SUBLANE))
    else:
        tm = block_m
    b_pad = _round_up(batch, tm)

    xp = x.astype(compute_dtype)
    if b_pad != batch:
        xp = jnp.pad(xp, ((0, b_pad - batch), (0, 0)))

    kernel = _make_fc_kernel(num_fc_layers, activation)

    def _resident(arr):
        # Whole-array block, same block index every grid step -> the weight /
        # bias is DMA'd once and stays resident in VMEM across the batch grid.
        return pl.BlockSpec(arr.shape, lambda i: (0, 0))

    in_specs = [pl.BlockSpec((tm, in_size), lambda i: (i, 0))]
    operands = [xp]
    if num_fc_layers >= 2:
        in_specs += [_resident(prepped["w1"]), _resident(prepped["b1"])]
        operands += [prepped["w1"], prepped["b1"]]
        for i in range(num_fc_layers - 2):
            in_specs += [_resident(prepped[f"w_mid{i}"]),
                         _resident(prepped[f"b_mid{i}"])]
            operands += [prepped[f"w_mid{i}"], prepped[f"b_mid{i}"]]
    in_specs.append(_resident(prepped["w_out"]))
    operands.append(prepped["w_out"])

    out = pl.pallas_call(
        kernel,
        grid=(b_pad // tm,),
        in_specs=in_specs,
        out_specs=pl.BlockSpec((tm, out_pad), lambda i: (i, 0)),
        out_shape=jax.ShapeDtypeStruct((b_pad, out_pad), jnp.float32),
        compiler_params=pltpu.CompilerParams(
            dimension_semantics=("parallel",)),   # shard batch across v7x TCs
    )(*operands)

    return out[:batch, :output_size]


# ----------------------------------------------------------------------------
# Parameters (deterministic, PyTorch-Linear-like uniform init)
# ----------------------------------------------------------------------------
def init_params(key, input_size, output_size, num_fc_layers=4):
    def linear_init(k, fan_in, fan_out, bias=True):
        kw, kb = jax.random.split(k)
        bound = 1.0 / (fan_in ** 0.5)
        # Stored as (in, out) = W^T so the kernel computes x @ W directly.
        w = jax.random.uniform(kw, (fan_in, fan_out), jnp.float32, -bound, bound)
        if not bias:
            return w, None
        b = jax.random.uniform(kb, (1, fan_out), jnp.float32, -bound, bound)
        return w, b

    p = {}
    if num_fc_layers == 1:
        p["w_out"], _ = linear_init(key, input_size, output_size, bias=False)
        return p

    n_mid = num_fc_layers - 2
    keys = jax.random.split(key, 2 + n_mid)
    p["w1"], p["b1"] = linear_init(keys[0], input_size, 256)
    # BatchNorm1d(256): PyTorch defaults (gamma=1, beta=0, mean=0, var=1).
    p["bn_gamma"] = jnp.ones((1, 256), jnp.float32)
    p["bn_beta"] = jnp.zeros((1, 256), jnp.float32)
    p["bn_mean"] = jnp.zeros((1, 256), jnp.float32)
    p["bn_var"] = jnp.ones((1, 256), jnp.float32)
    for i in range(n_mid):
        p[f"w_mid{i}"], p[f"b_mid{i}"] = linear_init(keys[1 + i], 256, 256)
    p["w_out"], _ = linear_init(keys[-1], 256, output_size, bias=False)
    return p


# ----------------------------------------------------------------------------
# References for correctness checks
# ----------------------------------------------------------------------------
def _reference_f32(x, params, num_fc_layers, activation):
    """Original module semantics, full f32 (unfolded BN)."""
    act = jnp.tanh if activation.lower() == "tanh" else jax.nn.relu
    if num_fc_layers == 1:
        return x @ params["w_out"]
    h = x @ params["w1"] + params["b1"]
    h = (h - params["bn_mean"]) * (
        params["bn_gamma"] / jnp.sqrt(params["bn_var"] + _BN_EPS)
    ) + params["bn_beta"]
    h = act(h)
    for i in range(num_fc_layers - 2):
        h = act(h @ params[f"w_mid{i}"] + params[f"b_mid{i}"])
    return h @ params["w_out"]


def _reference_prepped(x, prepped, num_fc_layers, activation, output_size):
    """Same dtypes as the kernel (bf16 matmuls, f32 accumulation)."""
    act = jnp.tanh if activation.lower() == "tanh" else jax.nn.relu
    dt = prepped["w_out"].dtype
    if num_fc_layers == 1:
        out = jnp.dot(x.astype(dt), prepped["w_out"],
                      preferred_element_type=jnp.float32)
        return out[:, :output_size]
    h = jnp.dot(x.astype(dt), prepped["w1"],
                preferred_element_type=jnp.float32) + prepped["b1"]
    h = act(h)
    for i in range(num_fc_layers - 2):
        h = act(jnp.dot(h.astype(dt), prepped[f"w_mid{i}"],
                        preferred_element_type=jnp.float32)
                + prepped[f"b_mid{i}"])
    out = jnp.dot(h.astype(dt), prepped["w_out"],
                  preferred_element_type=jnp.float32)
    return out[:, :output_size]


if __name__ == "__main__":
    key = jax.random.PRNGKey(0)
    pkey, xkey, xkey2 = jax.random.split(key, 3)

    INPUT_SIZE = 32
    OUTPUT_SIZE = 16
    BATCH = 8
    NUM_FC_LAYERS = 4        # module default -> FC_4 branch
    ACTIVATION = "relu"
    DROPOUT = 0.1            # inactive at inference

    params = init_params(pkey, INPUT_SIZE, OUTPUT_SIZE, NUM_FC_LAYERS)
    prepped = prepare_params(params, num_fc_layers=NUM_FC_LAYERS)

    fwd = jax.jit(functools.partial(fc_modules_forward,
                                    num_fc_layers=NUM_FC_LAYERS,
                                    activation=ACTIVATION,
                                    output_size=OUTPUT_SIZE))

    # --- small batch (single grid step) ---
    x = jax.random.normal(xkey, (BATCH, INPUT_SIZE), jnp.float32)
    out = jax.block_until_ready(fwd(x, prepped))
    assert out.shape == (BATCH, OUTPUT_SIZE), out.shape
    assert out.dtype == jnp.float32

    ref_dt = _reference_prepped(x, prepped, NUM_FC_LAYERS, ACTIVATION, OUTPUT_SIZE)
    assert bool(jnp.allclose(out, ref_dt, rtol=1e-3, atol=1e-3)), \
        float(jnp.max(jnp.abs(out - ref_dt)))
    ref_f32 = _reference_f32(x, params, NUM_FC_LAYERS, ACTIVATION)
    assert bool(jnp.allclose(out, ref_f32, rtol=3e-2, atol=3e-2)), \
        float(jnp.max(jnp.abs(out - ref_f32)))

    # --- larger batch (multi-step grid, exercises padding + pipelining) ---
    x2 = jax.random.normal(xkey2, (300, INPUT_SIZE), jnp.float32)
    out2 = jax.block_until_ready(fwd(x2, prepped))
    assert out2.shape == (300, OUTPUT_SIZE), out2.shape
    ref2 = _reference_prepped(x2, prepped, NUM_FC_LAYERS, ACTIVATION, OUTPUT_SIZE)
    assert bool(jnp.allclose(out2, ref2, rtol=1e-3, atol=1e-3)), \
        float(jnp.max(jnp.abs(out2 - ref2)))

    print("KERNEL_OK")
</pallas_src>

<mosaic_0001>
module attributes {stable_mosaic.version = 11 : i64} {
  func.func @kernel(%arg0: i32, %arg1: memref<8x32xbf16, #tpu.memory_space<vmem>>, %arg2: memref<32x256xbf16, #tpu.memory_space<vmem>>, %arg3: memref<1x256xf32, #tpu.memory_space<vmem>>, %arg4: memref<256x256xbf16, #tpu.memory_space<vmem>>, %arg5: memref<1x256xf32, #tpu.memory_space<vmem>>, %arg6: memref<256x256xbf16, #tpu.memory_space<vmem>>, %arg7: memref<1x256xf32, #tpu.memory_space<vmem>>, %arg8: memref<256x128xbf16, #tpu.memory_space<vmem>>, %arg9: memref<8x128xf32, #tpu.memory_space<vmem>>) attributes {dimension_semantics = [#tpu.dimension_semantics<parallel>], iteration_bounds = array<i64: 1>, scalar_prefetch = 0 : i64, scratch_operands = 0 : i64, tpu.core_type = #tpu.core_type<tc>, window_params = [{transform_indices = @transform_0, window_bounds = array<i64: 8, 32>}, {pipeline_mode = #tpu.pipeline_mode<synchronous>, transform_indices = @transform_1, window_bounds = array<i64: 32, 256>}, {pipeline_mode = #tpu.pipeline_mode<synchronous>, transform_indices = @transform_2, window_bounds = array<i64: 1, 256>}, {pipeline_mode = #tpu.pipeline_mode<synchronous>, transform_indices = @transform_3, window_bounds = array<i64: 256, 256>}, {pipeline_mode = #tpu.pipeline_mode<synchronous>, transform_indices = @transform_4, window_bounds = array<i64: 1, 256>}, {pipeline_mode = #tpu.pipeline_mode<synchronous>, transform_indices = @transform_5, window_bounds = array<i64: 256, 256>}, {pipeline_mode = #tpu.pipeline_mode<synchronous>, transform_indices = @transform_6, window_bounds = array<i64: 1, 256>}, {pipeline_mode = #tpu.pipeline_mode<synchronous>, transform_indices = @transform_7, window_bounds = array<i64: 256, 128>}, {transform_indices = @transform_8, window_bounds = array<i64: 8, 128>}]} {
    %c0 = arith.constant 0 : index
    %c0_0 = arith.constant 0 : index
    %0 = vector.load %arg1[%c0, %c0_0] : memref<8x32xbf16, #tpu.memory_space<vmem>>, vector<8x32xbf16>
    %c0_1 = arith.constant 0 : index
    %c0_2 = arith.constant 0 : index
    %1 = vector.load %arg2[%c0_1, %c0_2] : memref<32x256xbf16, #tpu.memory_space<vmem>>, vector<32x256xbf16>
    %cst = arith.constant dense<0.000000e+00> : vector<8x256xf32>
    %2 = tpu.matmul %0, %1, %cst {dimension_numbers = #tpu.dot_dimension_numbers<[1], [0], [0], [1], [0, 0, 1, 1], [], []>} : vector<8x32xbf16>, vector<32x256xbf16>, vector<8x256xf32> -> vector<8x256xf32>
    %c0_3 = arith.constant 0 : index
    %c0_4 = arith.constant 0 : index
    %3 = vector.load %arg3[%c0_3, %c0_4] : memref<1x256xf32, #tpu.memory_space<vmem>>, vector<1x256xf32>
    %4 = vector.broadcast %3 : vector<1x256xf32> to vector<8x256xf32>
    %5 = arith.addf %2, %4 : vector<8x256xf32>
    %cst_5 = arith.constant 0.000000e+00 : f32
    %6 = vector.broadcast %cst_5 : f32 to vector<8x256xf32>
    %7 = arith.maximumf %5, %6 : vector<8x256xf32>
    %8 = arith.truncf %7 : vector<8x256xf32> to vector<8x256xbf16>
    %c0_6 = arith.constant 0 : index
    %c0_7 = arith.constant 0 : index
    %9 = vector.load %arg4[%c0_6, %c0_7] : memref<256x256xbf16, #tpu.memory_space<vmem>>, vector<256x256xbf16>
    %cst_8 = arith.constant dense<0.000000e+00> : vector<8x256xf32>
    %10 = tpu.matmul %8, %9, %cst_8 {dimension_numbers = #tpu.dot_dimension_numbers<[1], [0], [0], [1], [0, 0, 1, 1], [], []>} : vector<8x256xbf16>, vector<256x256xbf16>, vector<8x256xf32> -> vector<8x256xf32>
    %c0_9 = arith.constant 0 : index
    %c0_10 = arith.constant 0 : index
    %11 = vector.load %arg5[%c0_9, %c0_10] : memref<1x256xf32, #tpu.memory_space<vmem>>, vector<1x256xf32>
    %12 = vector.broadcast %11 : vector<1x256xf32> to vector<8x256xf32>
    %13 = arith.addf %10, %12 : vector<8x256xf32>
    %cst_11 = arith.constant 0.000000e+00 : f32
    %14 = vector.broadcast %cst_11 : f32 to vector<8x256xf32>
    %15 = arith.maximumf %13, %14 : vector<8x256xf32>
    %16 = arith.truncf %15 : vector<8x256xf32> to vector<8x256xbf16>
    %c0_12 = arith.constant 0 : index
    %c0_13 = arith.constant 0 : index
    %17 = vector.load %arg6[%c0_12, %c0_13] : memref<256x256xbf16, #tpu.memory_space<vmem>>, vector<256x256xbf16>
    %cst_14 = arith.constant dense<0.000000e+00> : vector<8x256xf32>
    %18 = tpu.matmul %16, %17, %cst_14 {dimension_numbers = #tpu.dot_dimension_numbers<[1], [0], [0], [1], [0, 0, 1, 1], [], []>} : vector<8x256xbf16>, vector<256x256xbf16>, vector<8x256xf32> -> vector<8x256xf32>
    %c0_15 = arith.constant 0 : index
    %c0_16 = arith.constant 0 : index
    %19 = vector.load %arg7[%c0_15, %c0_16] : memref<1x256xf32, #tpu.memory_space<vmem>>, vector<1x256xf32>
    %20 = vector.broadcast %19 : vector<1x256xf32> to vector<8x256xf32>
    %21 = arith.addf %18, %20 : vector<8x256xf32>
    %cst_17 = arith.constant 0.000000e+00 : f32
    %22 = vector.broadcast %cst_17 : f32 to vector<8x256xf32>
    %23 = arith.maximumf %21, %22 : vector<8x256xf32>
    %24 = arith.truncf %23 : vector<8x256xf32> to vector<8x256xbf16>
    %c0_18 = arith.constant 0 : index
    %c0_19 = arith.constant 0 : index
    %25 = vector.load %arg8[%c0_18, %c0_19] : memref<256x128xbf16, #tpu.memory_space<vmem>>, vector<256x128xbf16>
    %cst_20 = arith.constant dense<0.000000e+00> : vector<8x128xf32>
    %26 = tpu.matmul %24, %25, %cst_20 {dimension_numbers = #tpu.dot_dimension_numbers<[1], [0], [0], [1], [0, 0, 1, 1], [], []>} : vector<8x256xbf16>, vector<256x128xbf16>, vector<8x128xf32> -> vector<8x128xf32>
    %c0_21 = arith.constant 0 : index
    %c0_22 = arith.constant 0 : index
    %27 = vector.load %arg9[%c0_21, %c0_22] : memref<8x128xf32, #tpu.memory_space<vmem>>, vector<8x128xf32>
    tpu.vector_store %arg9[%c0_21, %c0_22], %26 {strides = array<i32>} : memref<8x128xf32, #tpu.memory_space<vmem>>, vector<8x128xf32>,
    return
  }
  func.func @transform_0(%arg0: i32) -> (i32, i32) {
    %c0_i32 = arith.constant 0 : i32
    %c0_i32_0 = arith.constant 0 : i32
    return %arg0, %c0_i32 : i32, i32
  }
  func.func @transform_1(%arg0: i32) -> (i32, i32) {
    %c0_i32 = arith.constant 0 : i32
    %c0_i32_0 = arith.constant 0 : i32
    %c0_i32_1 = arith.constant 0 : i32
    return %c0_i32, %c0_i32_0 : i32, i32
  }
  func.func @transform_2(%arg0: i32) -> (i32, i32) {
    %c0_i32 = arith.constant 0 : i32
    %c0_i32_0 = arith.constant 0 : i32
    %c0_i32_1 = arith.constant 0 : i32
    return %c0_i32, %c0_i32_0 : i32, i32
  }
  func.func @transform_3(%arg0: i32) -> (i32, i32) {
    %c0_i32 = arith.constant 0 : i32
    %c0_i32_0 = arith.constant 0 : i32
    %c0_i32_1 = arith.constant 0 : i32
    return %c0_i32, %c0_i32_0 : i32, i32
  }
  func.func @transform_4(%arg0: i32) -> (i32, i32) {
    %c0_i32 = arith.constant 0 : i32
    %c0_i32_0 = arith.constant 0 : i32
    %c0_i32_1 = arith.constant 0 : i32
    return %c0_i32, %c0_i32_0 : i32, i32
  }
  func.func @transform_5(%arg0: i32) -> (i32, i32) {
    %c0_i32 = arith.constant 0 : i32
    %c0_i32_0 = arith.constant 0 : i32
    %c0_i32_1 = arith.constant 0 : i32
    return %c0_i32, %c0_i32_0 : i32, i32
  }
  func.func @transform_6(%arg0: i32) -> (i32, i32) {
    %c0_i32 = arith.constant 0 : i32
    %c0_i32_0 = arith.constant 0 : i32
    %c0_i32_1 = arith.constant 0 : i32
    return %c0_i32, %c0_i32_0 : i32, i32
  }
  func.func @transform_7(%arg0: i32) -> (i32, i32) {
    %c0_i32 = arith.constant 0 : i32
    %c0_i32_0 = arith.constant 0 : i32
    %c0_i32_1 = arith.constant 0 : i32
    return %c0_i32, %c0_i32_0 : i32, i32
  }
  func.func @transform_8(%arg0: i32) -> (i32, i32) {
    %c0_i32 = arith.constant 0 : i32
    %c0_i32_0 = arith.constant 0 : i32
    return %arg0, %c0_i32 : i32, i32
  }
}

</mosaic_0001>

<llo_original>
// kernel: fc_modules_forward.1
$region0: #{fc_modules_forward.1}
  #allocation0 [shape = 'u32[]', space=smem, size = 0x4, offset = 0x4, fixed_abs, tag = 'smem constant byte address 0x4 - core index']
  #allocation1 [shape = 'u32[144,128]{1,0:T(1,128)}', space=vmem, size = 0x12000, scoped, tag = 'internal scratch']
  %s0 = inlined_call_operand.vmem [shape: bf16[8,32], index: 0, kind: input, shape index: {}]
  %s1 = inlined_call_operand.hbm [shape: bf16[32,256], index: 1, kind: input, shape index: {}]
  %s2 = inlined_call_operand.vmem [shape: f32[1,256], index: 2, kind: input, shape index: {}]
  %s3 = inlined_call_operand.hbm [shape: bf16[256,256], index: 3, kind: input, shape index: {}]
  %s4 = inlined_call_operand.vmem [shape: f32[1,256], index: 4, kind: input, shape index: {}]
  %s5 = inlined_call_operand.hbm [shape: bf16[256,256], index: 5, kind: input, shape index: {}]
  %s6 = inlined_call_operand.vmem [shape: f32[1,256], index: 6, kind: input, shape index: {}]
  %s7 = inlined_call_operand.hbm [shape: bf16[256,128], index: 7, kind: input, shape index: {}]
  %s8 = inlined_call_operand.hbm [shape: f32[8,128], index: 8, kind: output, shape index: {}]
  %s9 = sld [smem:[#allocation0]]
  $region58: #{fc_modules_forward.1} parent=0
    _
  %s11 = ssub.s32 1, %s9
  %s12 = scalar_select 0, %s11, %s9
  $region1: #{fc_modules_forward.1} parent=0
    #allocation2 [shape = 'u8[16384]{0}', space=vmem, size = 0x4000, scoped, tag = 'input window, operand 1, single buffered']
    #allocation3 [shape = 's32[1]{0}', space=sflag, size = 0x4, scoped, tag = 'scoped memory for fc_modules_forward.1']
    #allocation4 [shape = 's32[1]{0}', space=sflag, size = 0x4, scoped, tag = 'scoped memory for fc_modules_forward.1']
    #allocation5 [shape = 'u8[131072]{0}', space=vmem, size = 0x20000, scoped, tag = 'input window, operand 3, single buffered']
    #allocation6 [shape = 's32[1]{0}', space=sflag, size = 0x4, scoped, tag = 'scoped memory for fc_modules_forward.1']
    #allocation7 [shape = 'u8[131072]{0}', space=vmem, size = 0x20000, scoped, tag = 'input window, operand 5, single buffered']
    #allocation8 [shape = 'u8[65536]{0}', space=vmem, size = 0x10000, scoped, tag = 'input window, operand 7, single buffered']
    #allocation9 [shape = 's32[1]{0}', space=sflag, size = 0x4, scoped, tag = 'scoped memory for fc_modules_forward.1']
    #allocation10 [shape = 'u8[4096]{0}', space=vmem, size = 0x1000, scoped, tag = 'output window, operand 0, single buffered']
    %13 = vsyncpa [#allocation3], 0
    %14 = vsyncpa [#allocation6], 0
    %15 = vsyncpa [#allocation9], 0
    %16 = vsyncpa [#allocation4], 0
    // Predicated region
    $region2: #{fc_modules_forward.1} parent=1 // pred_check
      _
    $region3: #{fc_modules_forward.1} parent=1 // pred_check_branch
      %18 = sbr.rel (0) target = $region5
    $region4: #{fc_modules_forward.1} parent=1 // pred_region
      _
    $region5: #{fc_modules_forward.1} parent=1 // pred_fallthru
      _
    // Predicated region
    $region6: #{fc_modules_forward.1} parent=1 // pred_check
      _
    $region7: #{fc_modules_forward.1} parent=1 // pred_check_branch
      %20 = sbr.rel (0) target = $region9
    $region8: #{fc_modules_forward.1} parent=1 // pred_region
      %s22 = ssub.s32 512, 512
      %23 = vsyncadd [#allocation3], %s22
      %s24 = sshll.u32 [#allocation2], 4
      %s25 = int_to_ptr.vmem [resolvable:$true] %s24
      %30 = dma.hbm_to_vmem [thread:$0]  %s1, 512, %s25, [#allocation3], 128, 128, 8
    $region9: #{fc_modules_forward.1} parent=1 // pred_fallthru
      _
    // Predicated region
    $region10: #{fc_modules_forward.1} parent=1 // pred_check
      _
    $region11: #{fc_modules_forward.1} parent=1 // pred_check_branch
      %32 = sbr.rel (0) target = $region13
    $region12: #{fc_modules_forward.1} parent=1 // pred_region
      _
    $region13: #{fc_modules_forward.1} parent=1 // pred_fallthru
      _
    // Predicated region
    $region14: #{fc_modules_forward.1} parent=1 // pred_check
      _
    $region15: #{fc_modules_forward.1} parent=1 // pred_check_branch
      %34 = sbr.rel (0) target = $region17
    $region16: #{fc_modules_forward.1} parent=1 // pred_region
      %s36 = ssub.s32 4096, 4096
      %37 = vsyncadd [#allocation6], %s36
      %s38 = sshll.u32 [#allocation5], 4
      %s39 = int_to_ptr.vmem [resolvable:$true] %s38
      %44 = dma.hbm_to_vmem [thread:$0]  %s3, 4096, %s39, [#allocation6], 128, 128, 8
    $region17: #{fc_modules_forward.1} parent=1 // pred_fallthru
      _
    // Predicated region
    $region18: #{fc_modules_forward.1} parent=1 // pred_check
      _
    $region19: #{fc_modules_forward.1} parent=1 // pred_check_branch
      %46 = sbr.rel (0) target = $region21
    $region20: #{fc_modules_forward.1} parent=1 // pred_region
      _
    $region21: #{fc_modules_forward.1} parent=1 // pred_fallthru
      _
    // Predicated region
    $region22: #{fc_modules_forward.1} parent=1 // pred_check
      _
    $region23: #{fc_modules_forward.1} parent=1 // pred_check_branch
      %48 = sbr.rel (0) target = $region25
    $region24: #{fc_modules_forward.1} parent=1 // pred_region
      %s50 = ssub.s32 4096, 4096
      %51 = vsyncadd [#allocation6], %s50
      %s52 = sshll.u32 [#allocation7], 4
      %s53 = int_to_ptr.vmem [resolvable:$true] %s52
      %58 = dma.hbm_to_vmem [thread:$0]  %s5, 4096, %s53, [#allocation6], 128, 128, 8
    $region25: #{fc_modules_forward.1} parent=1 // pred_fallthru
      _
    // Predicated region
    $region26: #{fc_modules_forward.1} parent=1 // pred_check
      _
    $region27: #{fc_modules_forward.1} parent=1 // pred_check_branch
      %60 = sbr.rel (0) target = $region29
    $region28: #{fc_modules_forward.1} parent=1 // pred_region
      _
    $region29: #{fc_modules_forward.1} parent=1 // pred_fallthru
      _
    // Predicated region
    $region30: #{fc_modules_forward.1} parent=1 // pred_check
      _
    $region31: #{fc_modules_forward.1} parent=1 // pred_check_branch
      %62 = sbr.rel (0) target = $region33
    $region32: #{fc_modules_forward.1} parent=1 // pred_region
      %s64 = ssub.s32 2048, 2048
      %65 = vsyncadd [#allocation9], %s64
      %s66 = sshll.u32 [#allocation8], 4
      %s67 = int_to_ptr.vmem [resolvable:$true] %s66
      %72 = dma.hbm_to_vmem [thread:$0]  %s7, 2048, %s67, [#allocation9], 64, 64, 4
    $region33: #{fc_modules_forward.1} parent=1 // pred_fallthru
      _
    // Predicated region
    $region34: #{fc_modules_forward.1} parent=1 // pred_check
      _
    $region35: #{fc_modules_forward.1} parent=1 // pred_check_branch
      %74 = sbr.rel (0) target = $region37
    $region36: #{fc_modules_forward.1} parent=1 // pred_region
      %75 = dma.done [#allocation3], 512
    $region37: #{fc_modules_forward.1} parent=1 // pred_fallthru
      _
    // Predicated region
    $region38: #{fc_modules_forward.1} parent=1 // pred_check
      _
    $region39: #{fc_modules_forward.1} parent=1 // pred_check_branch
      %77 = sbr.rel (0) target = $region41
    $region40: #{fc_modules_forward.1} parent=1 // pred_region
      %78 = dma.done [#allocation6], 4096
    $region41: #{fc_modules_forward.1} parent=1 // pred_fallthru
      _
    // Predicated region
    $region42: #{fc_modules_forward.1} parent=1 // pred_check
      _
    $region43: #{fc_modules_forward.1} parent=1 // pred_check_branch
      %80 = sbr.rel (0) target = $region45
    $region44: #{fc_modules_forward.1} parent=1 // pred_region
      %81 = dma.done [#allocation6], 4096
    $region45: #{fc_modules_forward.1} parent=1 // pred_fallthru
      _
    // Predicated region
    $region46: #{fc_modules_forward.1} parent=1 // pred_check
      _
    $region47: #{fc_modules_forward.1} parent=1 // pred_check_branch
      %83 = sbr.rel (0) target = $region49
    $region48: #{fc_modules_forward.1} parent=1 // pred_region
      %84 = dma.done [#allocation9], 2048
    $region49: #{fc_modules_forward.1} parent=1 // pred_fallthru
      _
    %v86 = vld [vmem:[%s0] sm:$0xf]
    %v87 = vld [vmem:[#allocation2] sm:$0xff]
    %v88 = vld [vmem:[#allocation2 + $0x8] sm:$0xff]
    %v89 = vld [vmem:[#allocation2 + $0x10] sm:$0xff]
    %v90 = vld [vmem:[#allocation2 + $0x18] sm:$0xff]
    %v91 = vld [vmem:[%s2] sm:$0x3]
    %v93 = vlaneseq
    %v94 = vshrl.u32 %v93, 7
    %v95 = vsub.s32 0, %v94
    %v96 = vrot.slane %v91, %v95
    %v97 = vlaneseq
    %v98 = vshrl.u32 %v97, 7
    %v99 = vsub.s32 1, %v98
    %v100 = vrot.slane %v91, %v99
    %v107 = vunpack.c.l.b16 %v87
    %v108 = vunpack.c.h.b16 %v87
    %v109 = vunpack.c.l.b16 %v88
    %v110 = vunpack.c.h.b16 %v88
    %v111 = vunpack.c.l.b16 %v89
    %v112 = vunpack.c.h.b16 %v89
    %v113 = vunpack.c.l.b16 %v90
    %v114 = vunpack.c.h.b16 %v90
    %v115 = vpack.c.b16 %v109, %v107
    %v116 = vpack.c.b16 %v110, %v108
    %v117 = vpack.c.b16 %v113, %v111
    %v118 = vpack.c.b16 %v114, %v112
    %vm123 = vcmask 261120
    %v125 = vsel %vm123, %v86, 0
    %127 = vmatprep.subr.bf16.mxu0 %v116
    %128 = vmatpush1.bf16.msra.mxu0 %v115
    %129 = vmatprep.subr.bf16.mxu0 %v118
    %130 = vmatpush1.bf16.msra.mxu0 %v117
    %131 = vmatprep.subr.bf16.mxu0 0
    %132 = vmatpush1.bf16.msra.mxu0 0
    %133 = vmatprep.subr.bf16.mxu0 0
    %134 = vmatpush1.bf16.msra.mxu0 0
    %135 = vmatprep.subr.bf16.mxu0 0
    %136 = vmatpush1.bf16.msra.mxu0 0
    %137 = vmatprep.subr.bf16.mxu0 0
    %138 = vmatpush1.bf16.msra.mxu0 0
    %139 = vmatprep.subr.bf16.mxu0 0
    %140 = vmatpush1.bf16.msra.mxu0 0
    %141 = vmatprep.subr.bf16.mxu0 0
    %142 = vmatpush1.bf16.msra.mxu0 0
    %143 = vmatprep.subr.bf16.mxu0 0
    %144 = vmatpush1.bf16.msra.mxu0 0
    %145 = vmatprep.subr.bf16.mxu0 0
    %146 = vmatpush1.bf16.msra.mxu0 0
    %147 = vmatprep.subr.bf16.mxu0 0
    %148 = vmatpush1.bf16.msra.mxu0 0
    %149 = vmatprep.subr.bf16.mxu0 0
    %150 = vmatpush1.bf16.msra.mxu0 0
    %151 = vmatprep.subr.bf16.mxu0 0
    %152 = vmatpush1.bf16.msra.mxu0 0
    %153 = vmatprep.subr.bf16.mxu0 0
    %154 = vmatpush1.bf16.msra.mxu0 0
    %155 = vmatprep.subr.bf16.mxu0 0
    %156 = vmatpush1.bf16.msra.mxu0 0
    %157 = vmatprep.subr.bf16.mxu0 0
    %158 = vmatpush1.bf16.msra.mxu0 0
    %159 = vmatprep.mubr.bf16.mxu0 0
    %160 = vmatmul.mubr.bf16.gmra.mrb[0].mxu0 %v125
    %v161 = vpop.f32.mrb[0].mxu0
    %v162 = vadd.f32 %v96, %v161
    %v163 = vpop.f32.mrb[0].mxu0
    %v164 = vadd.f32 %v100, %v163
    %v165 = vpop.f32.mrb[0].mxu0
    %v166 = vpop.f32.mrb[0].mxu0
    %167 = vdwg.mxu0
    %v168 = vmax.f32 %v162, 0.0
    %v169 = vmax.f32 %v164, 0.0
    %v170 = vpack.c.bf16 %v168, %v168
    %v171 = vpack.c.bf16 %v169, %v169
    %v172 = vld [vmem:[#allocation5] sm:$0xff]
    %v173 = vld [vmem:[#allocation5 + $0x8] sm:$0xff]
    %v174 = vld [vmem:[#allocation5 + $0x10] sm:$0xff]
    %v175 = vld [vmem:[#allocation5 + $0x18] sm:$0xff]
    %v176 = vld [vmem:[#allocation5 + $0x20] sm:$0xff]
    %v177 = vld [vmem:[#allocation5 + $0x28] sm:$0xff]
    %v178 = vld [vmem:[#allocation5 + $0x30] sm:$0xff]
    %v179 = vld [vmem:[#allocation5 + $0x38] sm:$0xff]
    %v180 = vld [vmem:[#allocation5 + $0x40] sm:$0xff]
    %v181 = vld [vmem:[#allocation5 + $0x48] sm:$0xff]
    %v182 = vld [vmem:[#allocation5 + $0x50] sm:$0xff]
    %v183 = vld [vmem:[#allocation5 + $0x58] sm:$0xff]
    %v184 = vld [vmem:[#allocation5 + $0x60] sm:$0xff]
    %v185 = vld [vmem:[#allocation5 + $0x68] sm:$0xff]
    %v186 = vld [vmem:[#allocation5 + $0x70] sm:$0xff]
    %v187 = vld [vmem:[#allocation5 + $0x78] sm:$0xff]
    %v188 = vld [vmem:[#allocation5 + $0x80] sm:$0xff]
    %v189 = vld [vmem:[#allocation5 + $0x88] sm:$0xff]
    %v190 = vld [vmem:[#allocation5 + $0x90] sm:$0xff]
    %v191 = vld [vmem:[#allocation5 + $0x98] sm:$0xff]
    %v192 = vld [vmem:[#allocation5 + $0xa0] sm:$0xff]
    %v193 = vld [vmem:[#allocation5 + $0xa8] sm:$0xff]
    %v194 = vld [vmem:[#allocation5 + $0xb0] sm:$0xff]
    %v195 = vld [vmem:[#allocation5 + $0xb8] sm:$0xff]
    %v196 = vld [vmem:[#allocation5 + $0xc0] sm:$0xff]
    %v197 = vld [vmem:[#allocation5 + $0xc8] sm:$0xff]
    %v198 = vld [vmem:[#allocation5 + $0xd0] sm:$0xff]
    %v199 = vld [vmem:[#allocation5 + $0xd8] sm:$0xff]
    %v200 = vld [vmem:[#allocation5 + $0xe0] sm:$0xff]
    %v201 = vld [vmem:[#allocation5 + $0xe8] sm:$0xff]
    %v202 = vld [vmem:[#allocation5 + $0xf0] sm:$0xff]
    %v203 = vld [vmem:[#allocation5 + $0xf8] sm:$0xff]
    %v204 = vld [vmem:[%s4] sm:$0x3]
    %v206 = vlaneseq
    %v207 = vshrl.u32 %v206, 7
    %v208 = vsub.s32 0, %v207
    %v209 = vrot.slane %v204, %v208
    %v210 = vlaneseq
    %v211 = vshrl.u32 %v210, 7
    %v212 = vsub.s32 1, %v211
    %v213 = vrot.slane %v204, %v212
    %v248 = vunpack.c.l.b16 %v172
    %v249 = vunpack.c.h.b16 %v172
    %v250 = vunpack.c.l.b16 %v173
    %v251 = vunpack.c.h.b16 %v173
    %v252 = vunpack.c.l.b16 %v174
    %v253 = vunpack.c.h.b16 %v174
    %v254 = vunpack.c.l.b16 %v175
    %v255 = vunpack.c.h.b16 %v175
    %v256 = vunpack.c.l.b16 %v176
    %v257 = vunpack.c.h.b16 %v176
    %v258 = vunpack.c.l.b16 %v177
    %v259 = vunpack.c.h.b16 %v177
    %v260 = vunpack.c.l.b16 %v178
    %v261 = vunpack.c.h.b16 %v178
    %v262 = vunpack.c.l.b16 %v179
    %v263 = vunpack.c.h.b16 %v179
    %v264 = vunpack.c.l.b16 %v180
    %v265 = vunpack.c.h.b16 %v180
    %v266 = vunpack.c.l.b16 %v181
    %v267 = vunpack.c.h.b16 %v181
    %v268 = vunpack.c.l.b16 %v182
    %v269 = vunpack.c.h.b16 %v182
    %v270 = vunpack.c.l.b16 %v183
    %v271 = vunpack.c.h.b16 %v183
    %v272 = vunpack.c.l.b16 %v184
    %v273 = vunpack.c.h.b16 %v184
    %v274 = vunpack.c.l.b16 %v185
    %v275 = vunpack.c.h.b16 %v185
    %v276 = vunpack.c.l.b16 %v186
    %v277 = vunpack.c.h.b16 %v186
    %v278 = vunpack.c.l.b16 %v187
    %v279 = vunpack.c.h.b16 %v187
    %v280 = vunpack.c.l.b16 %v188
    %v281 = vunpack.c.h.b16 %v188
    %v282 = vunpack.c.l.b16 %v189
    %v283 = vunpack.c.h.b16 %v189
    %v284 = vunpack.c.l.b16 %v190
    %v285 = vunpack.c.h.b16 %v190
    %v286 = vunpack.c.l.b16 %v191
    %v287 = vunpack.c.h.b16 %v191
    %v288 = vunpack.c.l.b16 %v192
    %v289 = vunpack.c.h.b16 %v192
    %v290 = vunpack.c.l.b16 %v193
    %v291 = vunpack.c.h.b16 %v193
    %v292 = vunpack.c.l.b16 %v194
    %v293 = vunpack.c.h.b16 %v194
    %v294 = vunpack.c.l.b16 %v195
    %v295 = vunpack.c.h.b16 %v195
    %v296 = vunpack.c.l.b16 %v196
    %v297 = vunpack.c.h.b16 %v196
    %v298 = vunpack.c.l.b16 %v197
    %v299 = vunpack.c.h.b16 %v197
    %v300 = vunpack.c.l.b16 %v198
    %v301 = vunpack.c.h.b16 %v198
    %v302 = vunpack.c.l.b16 %v199
    %v303 = vunpack.c.h.b16 %v199
    %v304 = vunpack.c.l.b16 %v200
    %v305 = vunpack.c.h.b16 %v200
    %v306 = vunpack.c.l.b16 %v201
    %v307 = vunpack.c.h.b16 %v201
    %v308 = vunpack.c.l.b16 %v202
    %v309 = vunpack.c.h.b16 %v202
    %v310 = vunpack.c.l.b16 %v203
    %v311 = vunpack.c.h.b16 %v203
    %v312 = vpack.c.b16 %v250, %v248
    %v313 = vpack.c.b16 %v251, %v249
    %v314 = vpack.c.b16 %v254, %v252
    %v315 = vpack.c.b16 %v255, %v253
    %v316 = vpack.c.b16 %v258, %v256
    %v317 = vpack.c.b16 %v259, %v257
    %v318 = vpack.c.b16 %v262, %v260
    %v319 = vpack.c.b16 %v263, %v261
    %v320 = vpack.c.b16 %v266, %v264
    %v321 = vpack.c.b16 %v267, %v265
    %v322 = vpack.c.b16 %v270, %v268
    %v323 = vpack.c.b16 %v271, %v269
    %v324 = vpack.c.b16 %v274, %v272
    %v325 = vpack.c.b16 %v275, %v273
    %v326 = vpack.c.b16 %v278, %v276
    %v327 = vpack.c.b16 %v279, %v277
    %v328 = vpack.c.b16 %v282, %v280
    %v329 = vpack.c.b16 %v283, %v281
    %v330 = vpack.c.b16 %v286, %v284
    %v331 = vpack.c.b16 %v287, %v285
    %v332 = vpack.c.b16 %v290, %v288
    %v333 = vpack.c.b16 %v291, %v289
    %v334 = vpack.c.b16 %v294, %v292
    %v335 = vpack.c.b16 %v295, %v293
    %v336 = vpack.c.b16 %v298, %v296
    %v337 = vpack.c.b16 %v299, %v297
    %v338 = vpack.c.b16 %v302, %v300
    %v339 = vpack.c.b16 %v303, %v301
    %v340 = vpack.c.b16 %v306, %v304
    %v341 = vpack.c.b16 %v307, %v305
    %v342 = vpack.c.b16 %v310, %v308
    %v343 = vpack.c.b16 %v311, %v309
    %376 = vmatprep.subr.bf16.mxu0 %v313
    %377 = vmatpush1.bf16.msra.mxu0 %v312
    %378 = vmatprep.subr.bf16.mxu0 %v315
    %379 = vmatpush1.bf16.msra.mxu0 %v314
    %380 = vmatprep.subr.bf16.mxu0 %v317
    %381 = vmatpush1.bf16.msra.mxu0 %v316
    %382 = vmatprep.subr.bf16.mxu0 %v319
    %383 = vmatpush1.bf16.msra.mxu0 %v318
    %384 = vmatprep.subr.bf16.mxu0 %v321
    %385 = vmatpush1.bf16.msra.mxu0 %v320
    %386 = vmatprep.subr.bf16.mxu0 %v323
    %387 = vmatpush1.bf16.msra.mxu0 %v322
    %388 = vmatprep.subr.bf16.mxu0 %v325
    %389 = vmatpush1.bf16.msra.mxu0 %v324
    %390 = vmatprep.subr.bf16.mxu0 %v327
    %391 = vmatpush1.bf16.msra.mxu0 %v326
    %392 = vmatprep.subr.bf16.mxu0 %v329
    %393 = vmatpush1.bf16.msra.mxu0 %v328
    %394 = vmatprep.subr.bf16.mxu0 %v331
    %395 = vmatpush1.bf16.msra.mxu0 %v330
    %396 = vmatprep.subr.bf16.mxu0 %v333
    %397 = vmatpush1.bf16.msra.mxu0 %v332
    %398 = vmatprep.subr.bf16.mxu0 %v335
    %399 = vmatpush1.bf16.msra.mxu0 %v334
    %400 = vmatprep.subr.bf16.mxu0 %v337
    %401 = vmatpush1.bf16.msra.mxu0 %v336
    %402 = vmatprep.subr.bf16.mxu0 %v339
    %403 = vmatpush1.bf16.msra.mxu0 %v338
    %404 = vmatprep.subr.bf16.mxu0 %v341
    %405 = vmatpush1.bf16.msra.mxu0 %v340
    %406 = vmatprep.subr.bf16.mxu0 %v343
    %407 = vmatpush1.bf16.msra.mxu0 %v342
    %408 = vmatprep.mubr.bf16.mxu0 %v171
    %409 = vmatmul.mubr.bf16.gmra.mrb[0].mxu0 %v170
    %v410 = vpop.f32.mrb[0].mxu0
    %v411 = vadd.f32 %v209, %v410
    %v412 = vpop.f32.mrb[0].mxu0
    %v413 = vadd.f32 %v213, %v412
    %v414 = vpop.f32.mrb[0].mxu0
    %v415 = vpop.f32.mrb[0].mxu0
    %416 = vdwg.mxu0
    %v417 = vmax.f32 %v411, 0.0
    %v418 = vmax.f32 %v413, 0.0
    %v419 = vpack.c.bf16 %v417, %v417
    %v420 = vpack.c.bf16 %v418, %v418
    %v421 = vld [vmem:[#allocation7] sm:$0xff]
    %v422 = vld [vmem:[#allocation7 + $0x8] sm:$0xff]
    %v423 = vld [vmem:[#allocation7 + $0x10] sm:$0xff]
    %v424 = vld [vmem:[#allocation7 + $0x18] sm:$0xff]
    %v425 = vld [vmem:[#allocation7 + $0x20] sm:$0xff]
    %v426 = vld [vmem:[#allocation7 + $0x28] sm:$0xff]
    %v427 = vld [vmem:[#allocation7 + $0x30] sm:$0xff]
    %v428 = vld [vmem:[#allocation7 + $0x38] sm:$0xff]
    %v429 = vld [vmem:[#allocation7 + $0x40] sm:$0xff]
    %v430 = vld [vmem:[#allocation7 + $0x48] sm:$0xff]
    %v431 = vld [vmem:[#allocation7 + $0x50] sm:$0xff]
    %v432 = vld [vmem:[#allocation7 + $0x58] sm:$0xff]
    %v433 = vld [vmem:[#allocation7 + $0x60] sm:$0xff]
    %v434 = vld [vmem:[#allocation7 + $0x68] sm:$0xff]
    %v435 = vld [vmem:[#allocation7 + $0x70] sm:$0xff]
    %v436 = vld [vmem:[#allocation7 + $0x78] sm:$0xff]
    %v437 = vld [vmem:[#allocation7 + $0x80] sm:$0xff]
    %v438 = vld [vmem:[#allocation7 + $0x88] sm:$0xff]
    %v439 = vld [vmem:[#allocation7 + $0x90] sm:$0xff]
    %v440 = vld [vmem:[#allocation7 + $0x98] sm:$0xff]
    %v441 = vld [vmem:[#allocation7 + $0xa0] sm:$0xff]
    %v442 = vld [vmem:[#allocation7 + $0xa8] sm:$0xff]
    %v443 = vld [vmem:[#allocation7 + $0xb0] sm:$0xff]
    %v444 = vld [vmem:[#allocation7 + $0xb8] sm:$0xff]
    %v445 = vld [vmem:[#allocation7 + $0xc0] sm:$0xff]
    %v446 = vld [vmem:[#allocation7 + $0xc8] sm:$0xff]
    %v447 = vld [vmem:[#allocation7 + $0xd0] sm:$0xff]
    %v448 = vld [vmem:[#allocation7 + $0xd8] sm:$0xff]
    %v449 = vld [vmem:[#allocation7 + $0xe0] sm:$0xff]
    %v450 = vld [vmem:[#allocation7 + $0xe8] sm:$0xff]
    %v451 = vld [vmem:[#allocation7 + $0xf0] sm:$0xff]
    %v452 = vld [vmem:[#allocation7 + $0xf8] sm:$0xff]
    %v453 = vld [vmem:[%s6] sm:$0x3]
    %v455 = vlaneseq
    %v456 = vshrl.u32 %v455, 7
    %v457 = vsub.s32 0, %v456
    %v458 = vrot.slane %v453, %v457
    %v459 = vlaneseq
    %v460 = vshrl.u32 %v459, 7
    %v461 = vsub.s32 1, %v460
    %v462 = vrot.slane %v453, %v461
    %v497 = vunpack.c.l.b16 %v421
    %v498 = vunpack.c.h.b16 %v421
    %v499 = vunpack.c.l.b16 %v422
    %v500 = vunpack.c.h.b16 %v422
    %v501 = vunpack.c.l.b16 %v423
    %v502 = vunpack.c.h.b16 %v423
    %v503 = vunpack.c.l.b16 %v424
    %v504 = vunpack.c.h.b16 %v424
    %v505 = vunpack.c.l.b16 %v425
    %v506 = vunpack.c.h.b16 %v425
    %v507 = vunpack.c.l.b16 %v426
    %v508 = vunpack.c.h.b16 %v426
    %v509 = vunpack.c.l.b16 %v427
    %v510 = vunpack.c.h.b16 %v427
    %v511 = vunpack.c.l.b16 %v428
    %v512 = vunpack.c.h.b16 %v428
    %v513 = vunpack.c.l.b16 %v429
    %v514 = vunpack.c.h.b16 %v429
    %v515 = vunpack.c.l.b16 %v430
    %v516 = vunpack.c.h.b16 %v430
    %v517 = vunpack.c.l.b16 %v431
    %v518 = vunpack.c.h.b16 %v431
    %v519 = vunpack.c.l.b16 %v432
    %v520 = vunpack.c.h.b16 %v432
    %v521 = vunpack.c.l.b16 %v433
    %v522 = vunpack.c.h.b16 %v433
    %v523 = vunpack.c.l.b16 %v434
    %v524 = vunpack.c.h.b16 %v434
    %v525 = vunpack.c.l.b16 %v435
    %v526 = vunpack.c.h.b16 %v435
    %v527 = vunpack.c.l.b16 %v436
    %v528 = vunpack.c.h.b16 %v436
    %v529 = vunpack.c.l.b16 %v437
    %v530 = vunpack.c.h.b16 %v437
    %v531 = vunpack.c.l.b16 %v438
    %v532 = vunpack.c.h.b16 %v438
    %v533 = vunpack.c.l.b16 %v439
    %v534 = vunpack.c.h.b16 %v439
    %v535 = vunpack.c.l.b16 %v440
    %v536 = vunpack.c.h.b16 %v440
    %v537 = vunpack.c.l.b16 %v441
    %v538 = vunpack.c.h.b16 %v441
    %v539 = vunpack.c.l.b16 %v442
    %v540 = vunpack.c.h.b16 %v442
    %v541 = vunpack.c.l.b16 %v443
    %v542 = vunpack.c.h.b16 %v443
    %v543 = vunpack.c.l.b16 %v444
    %v544 = vunpack.c.h.b16 %v444
    %v545 = vunpack.c.l.b16 %v445
    %v546 = vunpack.c.h.b16 %v445
    %v547 = vunpack.c.l.b16 %v446
    %v548 = vunpack.c.h.b16 %v446
    %v549 = vunpack.c.l.b16 %v447
    %v550 = vunpack.c.h.b16 %v447
    %v551 = vunpack.c.l.b16 %v448
    %v552 = vunpack.c.h.b16 %v448
    %v553 = vunpack.c.l.b16 %v449
    %v554 = vunpack.c.h.b16 %v449
    %v555 = vunpack.c.l.b16 %v450
    %v556 = vunpack.c.h.b16 %v450
    %v557 = vunpack.c.l.b16 %v451
    %v558 = vunpack.c.h.b16 %v451
    %v559 = vunpack.c.l.b16 %v452
    %v560 = vunpack.c.h.b16 %v452
    %v561 = vpack.c.b16 %v499, %v497
    %v562 = vpack.c.b16 %v500, %v498
    %v563 = vpack.c.b16 %v503, %v501
    %v564 = vpack.c.b16 %v504, %v502
    %v565 = vpack.c.b16 %v507, %v505
    %v566 = vpack.c.b16 %v508, %v506
    %v567 = vpack.c.b16 %v511, %v509
    %v568 = vpack.c.b16 %v512, %v510
    %v569 = vpack.c.b16 %v515, %v513
    %v570 = vpack.c.b16 %v516, %v514
    %v571 = vpack.c.b16 %v519, %v517
    %v572 = vpack.c.b16 %v520, %v518
    %v573 = vpack.c.b16 %v523, %v521
    %v574 = vpack.c.b16 %v524, %v522
    %v575 = vpack.c.b16 %v527, %v525
    %v576 = vpack.c.b16 %v528, %v526
    %v577 = vpack.c.b16 %v531, %v529
    %v578 = vpack.c.b16 %v532, %v530
    %v579 = vpack.c.b16 %v535, %v533
    %v580 = vpack.c.b16 %v536, %v534
    %v581 = vpack.c.b16 %v539, %v537
    %v582 = vpack.c.b16 %v540, %v538
    %v583 = vpack.c.b16 %v543, %v541
    %v584 = vpack.c.b16 %v544, %v542
    %v585 = vpack.c.b16 %v547, %v545
    %v586 = vpack.c.b16 %v548, %v546
    %v587 = vpack.c.b16 %v551, %v549
    %v588 = vpack.c.b16 %v552, %v550
    %v589 = vpack.c.b16 %v555, %v553
    %v590 = vpack.c.b16 %v556, %v554
    %v591 = vpack.c.b16 %v559, %v557
    %v592 = vpack.c.b16 %v560, %v558
    %625 = vmatprep.subr.bf16.mxu0 %v562
    %626 = vmatpush1.bf16.msra.mxu0 %v561
    %627 = vmatprep.subr.bf16.mxu0 %v564
    %628 = vmatpush1.bf16.msra.mxu0 %v563
    %629 = vmatprep.subr.bf16.mxu0 %v566
    %630 = vmatpush1.bf16.msra.mxu0 %v565
    %631 = vmatprep.subr.bf16.mxu0 %v568
    %632 = vmatpush1.bf16.msra.mxu0 %v567
    %633 = vmatprep.subr.bf16.mxu0 %v570
    %634 = vmatpush1.bf16.msra.mxu0 %v569
    %635 = vmatprep.subr.bf16.mxu0 %v572
    %636 = vmatpush1.bf16.msra.mxu0 %v571
    %637 = vmatprep.subr.bf16.mxu0 %v574
    %638 = vmatpush1.bf16.msra.mxu0 %v573
    %639 = vmatprep.subr.bf16.mxu0 %v576
    %640 = vmatpush1.bf16.msra.mxu0 %v575
    %641 = vmatprep.subr.bf16.mxu0 %v578
    %642 = vmatpush1.bf16.msra.mxu0 %v577
    %643 = vmatprep.subr.bf16.mxu0 %v580
    %644 = vmatpush1.bf16.msra.mxu0 %v579
    %645 = vmatprep.subr.bf16.mxu0 %v582
    %646 = vmatpush1.bf16.msra.mxu0 %v581
    %647 = vmatprep.subr.bf16.mxu0 %v584
    %648 = vmatpush1.bf16.msra.mxu0 %v583
    %649 = vmatprep.subr.bf16.mxu0 %v586
    %650 = vmatpush1.bf16.msra.mxu0 %v585
    %651 = vmatprep.subr.bf16.mxu0 %v588
    %652 = vmatpush1.bf16.msra.mxu0 %v587
    %653 = vmatprep.subr.bf16.mxu0 %v590
    %654 = vmatpush1.bf16.msra.mxu0 %v589
    %655 = vmatprep.subr.bf16.mxu0 %v592
    %656 = vmatpush1.bf16.msra.mxu0 %v591
    %657 = vmatprep.mubr.bf16.mxu0 %v420
    %658 = vmatmul.mubr.bf16.gmra.mrb[0].mxu0 %v419
    %v659 = vpop.f32.mrb[0].mxu0
    %v660 = vadd.f32 %v458, %v659
    %v661 = vpop.f32.mrb[0].mxu0
    %v662 = vadd.f32 %v462, %v661
    %v663 = vpop.f32.mrb[0].mxu0
    %v664 = vpop.f32.mrb[0].mxu0
    %665 = vdwg.mxu0
    %v666 = vmax.f32 %v660, 0.0
    %v667 = vmax.f32 %v662, 0.0
    %v668 = vpack.c.bf16 %v666, %v666
    %v669 = vpack.c.bf16 %v667, %v667
    %v670 = vld [vmem:[#allocation8] sm:$0xf]
    %v671 = vld [vmem:[#allocation8 + $0x4] sm:$0xf]
    %v672 = vld [vmem:[#allocation8 + $0x8] sm:$0xf]
    %v673 = vld [vmem:[#allocation8 + $0xc] sm:$0xf]
    %v674 = vld [vmem:[#allocation8 + $0x10] sm:$0xf]
    %v675 = vld [vmem:[#allocation8 + $0x14] sm:$0xf]
    %v676 = vld [vmem:[#allocation8 + $0x18] sm:$0xf]
    %v677 = vld [vmem:[#allocation8 + $0x1c] sm:$0xf]
    %v678 = vld [vmem:[#allocation8 + $0x20] sm:$0xf]
    %v679 = vld [vmem:[#allocation8 + $0x24] sm:$0xf]
    %v680 = vld [vmem:[#allocation8 + $0x28] sm:$0xf]
    %v681 = vld [vmem:[#allocation8 + $0x2c] sm:$0xf]
    %v682 = vld [vmem:[#allocation8 + $0x30] sm:$0xf]
    %v683 = vld [vmem:[#allocation8 + $0x34] sm:$0xf]
    %v684 = vld [vmem:[#allocation8 + $0x38] sm:$0xf]
    %v685 = vld [vmem:[#allocation8 + $0x3c] sm:$0xf]
    %v686 = vld [vmem:[#allocation8 + $0x40] sm:$0xf]
    %v687 = vld [vmem:[#allocation8 + $0x44] sm:$0xf]
    %v688 = vld [vmem:[#allocation8 + $0x48] sm:$0xf]
    %v689 = vld [vmem:[#allocation8 + $0x4c] sm:$0xf]
    %v690 = vld [vmem:[#allocation8 + $0x50] sm:$0xf]
    %v691 = vld [vmem:[#allocation8 + $0x54] sm:$0xf]
    %v692 = vld [vmem:[#allocation8 + $0x58] sm:$0xf]
    %v693 = vld [vmem:[#allocation8 + $0x5c] sm:$0xf]
    %v694 = vld [vmem:[#allocation8 + $0x60] sm:$0xf]
    %v695 = vld [vmem:[#allocation8 + $0x64] sm:$0xf]
    %v696 = vld [vmem:[#allocation8 + $0x68] sm:$0xf]
    %v697 = vld [vmem:[#allocation8 + $0x6c] sm:$0xf]
    %v698 = vld [vmem:[#allocation8 + $0x70] sm:$0xf]
    %v699 = vld [vmem:[#allocation8 + $0x74] sm:$0xf]
    %v700 = vld [vmem:[#allocation8 + $0x78] sm:$0xf]
    %v701 = vld [vmem:[#allocation8 + $0x7c] sm:$0xf]
    %v734 = vunpack.c.l.b16 %v670
    %v735 = vunpack.c.l.b16 %v671
    %v736 = vunpack.c.l.b16 %v672
    %v737 = vunpack.c.l.b16 %v673
    %v738 = vunpack.c.l.b16 %v674
    %v739 = vunpack.c.l.b16 %v675
    %v740 = vunpack.c.l.b16 %v676
    %v741 = vunpack.c.l.b16 %v677
    %v742 = vunpack.c.l.b16 %v678
    %v743 = vunpack.c.l.b16 %v679
    %v744 = vunpack.c.l.b16 %v680
    %v745 = vunpack.c.l.b16 %v681
    %v746 = vunpack.c.l.b16 %v682
    %v747 = vunpack.c.l.b16 %v683
    %v748 = vunpack.c.l.b16 %v684
    %v749 = vunpack.c.l.b16 %v685
    %v750 = vunpack.c.l.b16 %v686
    %v751 = vunpack.c.l.b16 %v687
    %v752 = vunpack.c.l.b16 %v688
    %v753 = vunpack.c.l.b16 %v689
    %v754 = vunpack.c.l.b16 %v690
    %v755 = vunpack.c.l.b16 %v691
    %v756 = vunpack.c.l.b16 %v692
    %v757 = vunpack.c.l.b16 %v693
    %v758 = vunpack.c.l.b16 %v694
    %v759 = vunpack.c.l.b16 %v695
    %v760 = vunpack.c.l.b16 %v696
    %v761 = vunpack.c.l.b16 %v697
    %v762 = vunpack.c.l.b16 %v698
    %v763 = vunpack.c.l.b16 %v699
    %v764 = vunpack.c.l.b16 %v700
    %v765 = vunpack.c.l.b16 %v701
    %v766 = vpack.c.b16 %v735, %v734
    %v767 = vpack.c.b16 %v737, %v736
    %v768 = vpack.c.b16 %v739, %v738
    %v769 = vpack.c.b16 %v741, %v740
    %v770 = vpack.c.b16 %v743, %v742
    %v771 = vpack.c.b16 %v745, %v744
    %v772 = vpack.c.b16 %v747, %v746
    %v773 = vpack.c.b16 %v749, %v748
    %v774 = vpack.c.b16 %v751, %v750
    %v775 = vpack.c.b16 %v753, %v752
    %v776 = vpack.c.b16 %v755, %v754
    %v777 = vpack.c.b16 %v757, %v756
    %v778 = vpack.c.b16 %v759, %v758
    %v779 = vpack.c.b16 %v761, %v760
    %v780 = vpack.c.b16 %v763, %v762
    %v781 = vpack.c.b16 %v765, %v764
    %798 = vmatprep.subr.bf16.mxu0 0
    %799 = vmatpush1.bf16.msra.mxu0 %v766
    %800 = vmatprep.subr.bf16.mxu0 0
    %801 = vmatpush1.bf16.msra.mxu0 %v767
    %802 = vmatprep.subr.bf16.mxu0 0
    %803 = vmatpush1.bf16.msra.mxu0 %v768
    %804 = vmatprep.subr.bf16.mxu0 0
    %805 = vmatpush1.bf16.msra.mxu0 %v769
    %806 = vmatprep.subr.bf16.mxu0 0
    %807 = vmatpush1.bf16.msra.mxu0 %v770
    %808 = vmatprep.subr.bf16.mxu0 0
    %809 = vmatpush1.bf16.msra.mxu0 %v771
    %810 = vmatprep.subr.bf16.mxu0 0
    %811 = vmatpush1.bf16.msra.mxu0 %v772
    %812 = vmatprep.subr.bf16.mxu0 0
    %813 = vmatpush1.bf16.msra.mxu0 %v773
    %814 = vmatprep.subr.bf16.mxu0 0
    %815 = vmatpush1.bf16.msra.mxu0 %v774
    %816 = vmatprep.subr.bf16.mxu0 0
    %817 = vmatpush1.bf16.msra.mxu0 %v775
    %818 = vmatprep.subr.bf16.mxu0 0
    %819 = vmatpush1.bf16.msra.mxu0 %v776
    %820 = vmatprep.subr.bf16.mxu0 0
    %821 = vmatpush1.bf16.msra.mxu0 %v777
    %822 = vmatprep.subr.bf16.mxu0 0
    %823 = vmatpush1.bf16.msra.mxu0 %v778
    %824 = vmatprep.subr.bf16.mxu0 0
    %825 = vmatpush1.bf16.msra.mxu0 %v779
    %826 = vmatprep.subr.bf16.mxu0 0
    %827 = vmatpush1.bf16.msra.mxu0 %v780
    %828 = vmatprep.subr.bf16.mxu0 0
    %829 = vmatpush1.bf16.msra.mxu0 %v781
    %830 = vmatprep.mubr.bf16.mxu0 %v669
    %831 = vmatmul.mubr.bf16.gmra.mrb[0].mxu0 %v668
    %v832 = vpop.f32.mrb[0].mxu0
    %v833 = vadd.f32 0.0, %v832
    %v834 = vpop.f32.mrb[0].mxu0
    %v835 = vpop.f32.mrb[0].mxu0
    %v836 = vpop.f32.mrb[0].mxu0
    %837 = vdwg.mxu0
    %838 = vst [vmem:[#allocation10] sm:$0xff] %v833
    // Predicated region
    $region50: #{fc_modules_forward.1} parent=1 // pred_check
      _
    $region51: #{fc_modules_forward.1} parent=1 // pred_check_branch
      %840 = sbr.rel (0) target = $region53
    $region52: #{fc_modules_forward.1} parent=1 // pred_region
      %s842 = ssub.s32 128, 128
      %843 = vsyncadd [#allocation4], %s842
      %s845 = sshll.u32 [#allocation10], 4
      %s846 = int_to_ptr.vmem [resolvable:$true] %s845
      %848 = dma.vmem_to_hbm [thread:$0]  %s846, 128, %s8, [#allocation4]
    $region53: #{fc_modules_forward.1} parent=1 // pred_fallthru
      _
    // Predicated region
    $region54: #{fc_modules_forward.1} parent=1 // pred_check
      _
    $region55: #{fc_modules_forward.1} parent=1 // pred_check_branch
      %850 = sbr.rel (0) target = $region57
    $region56: #{fc_modules_forward.1} parent=1 // pred_region
      %851 = dma.done [#allocation4], 128
    $region57: #{fc_modules_forward.1} parent=1 // pred_fallthru
      _
    %852 = vsyncpa [#allocation3], 1
    %853 = vsyncpa [#allocation6], 1
    %854 = vsyncpa [#allocation9], 1
    %855 = vsyncpa [#allocation4], 1

</llo_original>
